<compile_context>
chip_gen: v5e
topology: v5e:2x2
jax: 0.10.0
libtpu: 0.0.40
codegen_flags: <defaults>
</compile_context>

<pallas_src>
import functools

import jax
import jax.numpy as jnp
from jax.experimental import pallas as pl
from jax.experimental.pallas import tpu as pltpu


def _round_up(x, m):
    return (x + m - 1) // m * m


def _gcn_fre_kernel(text_ref, adj_ref, w_ref, b_ref, out_ref, *,
                    batch, compute_dtype):
    # text_ref: (B, N_p, F_in)      adj_ref: (tile, N_p)
    # w_ref:    (F_in, F_out_p)     b_ref:   (1, F_out_p)
    # out_ref:  (B, tile, F_out_p)
    adj_rows = adj_ref[...]                                        # (tile, N_p)

    # Per-destination-node degree + 1, computed once per row tile.
    deg = jnp.sum((adj_rows > 0.5).astype(jnp.float32),
                  axis=1, keepdims=True)                           # (tile, 1)
    denom = deg + 1.0
    inv = pl.reciprocal(denom, approx=True)                        # EUP slot
    inv = inv * (2.0 - denom * inv)                                # 1 Newton step

    adj_mx = adj_rows.astype(compute_dtype)
    w = w_ref[...].astype(compute_dtype)

    # Aggregation (adj_rows @ text[b]) per batch element, scaled by 1/denom.
    # The elementwise epilogue stays in f32 (v5e has no bf16 VPU).
    scaled = []
    for b in range(batch):
        x_b = text_ref[b].astype(compute_dtype)                    # (N_p, F_in)
        agg = jnp.dot(adj_mx, x_b,
                      preferred_element_type=jnp.float32)          # (tile, F_in)
        scaled.append(agg * inv)

    # Fold B into M for one dense W-side matmul: (B*tile, F_in) @ (F_in, F_out_p)
    folded = scaled[0] if batch == 1 else jnp.concatenate(scaled, axis=0)
    out2d = jnp.dot(folded.astype(compute_dtype), w,
                    preferred_element_type=jnp.float32) + b_ref[...]

    tile = adj_rows.shape[0]
    out_ref[...] = out2d.reshape(batch, tile, -1).astype(out_ref.dtype)


def graph_convolution_fre(text, adj, weight, bias=None, *, row_tile=None,
                          compute_dtype=jnp.float32):
    """text: [B, N, F_in], adj: [N, N], weight: [F_in, F_out], bias: [F_out]|None."""
    B, N, F_in = text.shape
    F_out = weight.shape[1]
    if bias is None:                       # bias=False path of the module
        bias = jnp.zeros((F_out,), dtype=jnp.float32)

    LANE, SUBLANE = 128, 8

    # Lane-dense output: pad F_out up to a multiple of 128 (zero W / bias
    # columns are exact and sliced away below).
    F_out_p = _round_up(F_out, LANE)

    # Row tile over destination nodes.  ~256 rows keeps the double-buffered
    # (tile, N) adjacency slab modest even on v7x's 64 MiB VMEM; for very large
    # N also raise pltpu.CompilerParams(vmem_limit_bytes=...).
    if row_tile is None:
        row_tile = min(_round_up(N, SUBLANE), 256)
    row_tile = _round_up(row_tile, SUBLANE)
    N_p = _round_up(N, row_tile)

    # Zero padding is exact: zero adjacency rows/cols contribute nothing to the
    # aggregation and do not change the > 0.5 degree count.
    if N_p != N:
        adj = jnp.pad(adj, ((0, N_p - N), (0, N_p - N)))
        text = jnp.pad(text, ((0, 0), (0, N_p - N), (0, 0)))
    if F_out_p != F_out:
        weight = jnp.pad(weight, ((0, 0), (0, F_out_p - F_out)))
        bias = jnp.pad(bias, (0, F_out_p - F_out))
    bias2d = bias.reshape(1, F_out_p)

    num_tiles = N_p // row_tile
    kernel = functools.partial(_gcn_fre_kernel, batch=B,
                               compute_dtype=compute_dtype)

    out_p = pl.pallas_call(
        kernel,
        out_shape=jax.ShapeDtypeStruct((B, N_p, F_out_p), jnp.float32),
        grid_spec=pltpu.PrefetchScalarGridSpec(
            num_scalar_prefetch=0,
            grid=(num_tiles,),
            in_specs=[
                # text / weight / bias: constant index maps -> fetched once and
                # revisited every grid step (tile-invariant operands).
                pl.BlockSpec((B, N_p, F_in), lambda i: (0, 0, 0)),
                pl.BlockSpec((row_tile, N_p), lambda i: (i, 0)),
                pl.BlockSpec((F_in, F_out_p), lambda i: (0, 0)),
                pl.BlockSpec((1, F_out_p), lambda i: (0, 0)),
            ],
            out_specs=pl.BlockSpec((B, row_tile, F_out_p),
                                   lambda i: (0, i, 0)),
        ),
        compiler_params=pltpu.CompilerParams(
            dimension_semantics=("parallel",)),
    )(text, adj, weight, bias2d)

    # Strip padding added for lane-dense stores / row tiling.
    return out_p[:, :N, :F_out]


def _reference(text, adj, weight, bias):
    hidden = jnp.matmul(text, weight)
    deom = (adj > 0.5).astype(jnp.float32)
    denom = jnp.sum(deom, axis=1, keepdims=True) + 1.0             # (N, 1)
    out = jnp.matmul(adj, hidden) / denom
    return out + bias


if __name__ == "__main__":
    B, N, F_in, F_out = 2, 16, 32, 64

    key = jax.random.PRNGKey(0)
    k_text, k_adj, k_w, k_b = jax.random.split(key, 4)

    text = jax.random.normal(k_text, (B, N, F_in), dtype=jnp.float32)
    # Adjacency with values in [0, 1]; entries > 0.5 count toward the degree.
    adj = jax.random.uniform(k_adj, (N, N), dtype=jnp.float32)

    # Deterministic parameter init (module's __init__ gives the shapes;
    # weights are synthetic, not loaded from a checkpoint).
    stdv = 1.0 / (F_out ** 0.5)
    weight = jax.random.uniform(k_w, (F_in, F_out), dtype=jnp.float32,
                                minval=-stdv, maxval=stdv)
    bias = jax.random.uniform(k_b, (F_out,), dtype=jnp.float32,
                              minval=-stdv, maxval=stdv)

    out = graph_convolution_fre(text, adj, weight, bias)
    out = jax.block_until_ready(out)

    ref = _reference(text, adj, weight, bias)
    assert out.shape == (B, N, F_out)
    assert jnp.allclose(out, ref, atol=1e-4, rtol=1e-4), "mismatch vs reference"

    print("KERNEL_OK")
</pallas_src>

<mosaic_0001>
module attributes {stable_mosaic.version = 11 : i64} {
  func.func @_gcn_fre_kernel(%arg0: i32, %arg1: memref<2x16x32xf32, #tpu.memory_space<vmem>>, %arg2: memref<16x16xf32, #tpu.memory_space<vmem>>, %arg3: memref<32x128xf32, #tpu.memory_space<vmem>>, %arg4: memref<1x128xf32, #tpu.memory_space<vmem>>, %arg5: memref<2x16x128xf32, #tpu.memory_space<vmem>>) attributes {dimension_semantics = [#tpu.dimension_semantics<parallel>], iteration_bounds = array<i64: 1>, scalar_prefetch = 0 : i64, scratch_operands = 0 : i64, tpu.core_type = #tpu.core_type<tc>, window_params = [{pipeline_mode = #tpu.pipeline_mode<synchronous>, transform_indices = @transform_0, window_bounds = array<i64: 2, 16, 32>}, {transform_indices = @transform_1, window_bounds = array<i64: 16, 16>}, {pipeline_mode = #tpu.pipeline_mode<synchronous>, transform_indices = @transform_2, window_bounds = array<i64: 32, 128>}, {pipeline_mode = #tpu.pipeline_mode<synchronous>, transform_indices = @transform_3, window_bounds = array<i64: 1, 128>}, {transform_indices = @transform_4, window_bounds = array<i64: 2, 16, 128>}]} {
    %c0 = arith.constant 0 : index
    %c0_0 = arith.constant 0 : index
    %0 = vector.load %arg2[%c0, %c0_0] : memref<16x16xf32, #tpu.memory_space<vmem>>, vector<16x16xf32>
    %cst = arith.constant 5.000000e-01 : f32
    %1 = vector.broadcast %cst : f32 to vector<16x16xf32>
    %2 = arith.cmpf ogt, %0, %1 : vector<16x16xf32>
    %3 = arith.extui %2 : vector<16x16xi1> to vector<16x16xi32>
    %4 = arith.sitofp %3 : vector<16x16xi32> to vector<16x16xf32>
    %cst_1 = arith.constant dense<0.000000e+00> : vector<16xf32>
    %5 = vector.multi_reduction <add>, %4, %cst_1 [1] : vector<16x16xf32> to vector<16xf32>
    %6 = vector.shape_cast %5 : vector<16xf32> to vector<16x1xf32>
    %cst_2 = arith.constant 1.000000e+00 : f32
    %7 = vector.broadcast %cst_2 : f32 to vector<16x1xf32>
    %8 = arith.addf %6, %7 : vector<16x1xf32>
    %9 = tpu.reciprocal %8 {approx = true} : vector<16x1xf32> -> vector<16x1xf32>
    %10 = arith.mulf %8, %9 : vector<16x1xf32>
    %cst_3 = arith.constant 2.000000e+00 : f32
    %11 = vector.broadcast %cst_3 : f32 to vector<16x1xf32>
    %12 = arith.subf %11, %10 : vector<16x1xf32>
    %13 = arith.mulf %9, %12 : vector<16x1xf32>
    %c0_4 = arith.constant 0 : index
    %c0_5 = arith.constant 0 : index
    %14 = vector.load %arg3[%c0_4, %c0_5] : memref<32x128xf32, #tpu.memory_space<vmem>>, vector<32x128xf32>
    %c0_6 = arith.constant 0 : index
    %c0_7 = arith.constant 0 : index
    %c0_8 = arith.constant 0 : index
    %15 = vector.load %arg1[%c0_6, %c0_7, %c0_8] : memref<2x16x32xf32, #tpu.memory_space<vmem>>, vector<1x16x32xf32>
    %16 = vector.shape_cast %15 : vector<1x16x32xf32> to vector<16x32xf32>
    %cst_9 = arith.constant dense<0.000000e+00> : vector<16x32xf32>
    %17 = tpu.matmul %0, %16, %cst_9 {dimension_numbers = #tpu.dot_dimension_numbers<[1], [0], [0], [1], [0, 0, 1, 1], [], []>} : vector<16x16xf32>, vector<16x32xf32>, vector<16x32xf32> -> vector<16x32xf32>
    %18 = vector.broadcast %13 : vector<16x1xf32> to vector<16x32xf32>
    %19 = arith.mulf %17, %18 : vector<16x32xf32>
    %c1 = arith.constant 1 : index
    %c0_10 = arith.constant 0 : index
    %c0_11 = arith.constant 0 : index
    %20 = vector.load %arg1[%c1, %c0_10, %c0_11] : memref<2x16x32xf32, #tpu.memory_space<vmem>>, vector<1x16x32xf32>
    %21 = vector.shape_cast %20 : vector<1x16x32xf32> to vector<16x32xf32>
    %cst_12 = arith.constant dense<0.000000e+00> : vector<16x32xf32>
    %22 = tpu.matmul %0, %21, %cst_12 {dimension_numbers = #tpu.dot_dimension_numbers<[1], [0], [0], [1], [0, 0, 1, 1], [], []>} : vector<16x16xf32>, vector<16x32xf32>, vector<16x32xf32> -> vector<16x32xf32>
    %23 = vector.broadcast %13 : vector<16x1xf32> to vector<16x32xf32>
    %24 = arith.mulf %22, %23 : vector<16x32xf32>
    %25 = tpu.concatenate %19, %24 in 0 : vector<16x32xf32>, vector<16x32xf32> -> vector<32x32xf32>
    %cst_13 = arith.constant dense<0.000000e+00> : vector<32x128xf32>
    %26 = tpu.matmul %25, %14, %cst_13 {dimension_numbers = #tpu.dot_dimension_numbers<[1], [0], [0], [1], [0, 0, 1, 1], [], []>} : vector<32x32xf32>, vector<32x128xf32>, vector<32x128xf32> -> vector<32x128xf32>
    %c0_14 = arith.constant 0 : index
    %c0_15 = arith.constant 0 : index
    %27 = vector.load %arg4[%c0_14, %c0_15] : memref<1x128xf32, #tpu.memory_space<vmem>>, vector<1x128xf32>
    %28 = vector.broadcast %27 : vector<1x128xf32> to vector<32x128xf32>
    %29 = arith.addf %26, %28 : vector<32x128xf32>
    %30 = vector.shape_cast %29 : vector<32x128xf32> to vector<2x16x128xf32>
    %c0_16 = arith.constant 0 : index
    %c0_17 = arith.constant 0 : index
    %c0_18 = arith.constant 0 : index
    %31 = vector.load %arg5[%c0_16, %c0_17, %c0_18] : memref<2x16x128xf32, #tpu.memory_space<vmem>>, vector<2x16x128xf32>
    tpu.vector_store %arg5[%c0_16, %c0_17, %c0_18], %30 {strides = array<i32>} : memref<2x16x128xf32, #tpu.memory_space<vmem>>, vector<2x16x128xf32>,
    return
  }
  func.func @transform_0(%arg0: i32) -> (i32, i32, i32) {
    %c0_i32 = arith.constant 0 : i32
    %c0_i32_0 = arith.constant 0 : i32
    %c0_i32_1 = arith.constant 0 : i32
    %c0_i32_2 = arith.constant 0 : i32
    return %c0_i32, %c0_i32_0, %c0_i32_1 : i32, i32, i32
  }
  func.func @transform_1(%arg0: i32) -> (i32, i32) {
    %c0_i32 = arith.constant 0 : i32
    %c0_i32_0 = arith.constant 0 : i32
    return %arg0, %c0_i32 : i32, i32
  }
  func.func @transform_2(%arg0: i32) -> (i32, i32) {
    %c0_i32 = arith.constant 0 : i32
    %c0_i32_0 = arith.constant 0 : i32
    %c0_i32_1 = arith.constant 0 : i32
    return %c0_i32, %c0_i32_0 : i32, i32
  }
  func.func @transform_3(%arg0: i32) -> (i32, i32) {
    %c0_i32 = arith.constant 0 : i32
    %c0_i32_0 = arith.constant 0 : i32
    %c0_i32_1 = arith.constant 0 : i32
    return %c0_i32, %c0_i32_0 : i32, i32
  }
  func.func @transform_4(%arg0: i32) -> (i32, i32, i32) {
    %c0_i32 = arith.constant 0 : i32
    %c0_i32_0 = arith.constant 0 : i32
    %c0_i32_1 = arith.constant 0 : i32
    return %c0_i32, %arg0, %c0_i32_0 : i32, i32, i32
  }
}

</mosaic_0001>

<llo_original>
// kernel: tpu_custom_call.1
$region0: #{tpu_custom_call.1}
  #allocation0 [shape = 'u32[]', space=smem, size = 0x4, offset = 0x4, fixed_abs, tag = 'smem constant byte address 0x4 - core index']
  #allocation1 [shape = 'u32[72,128]{1,0:T(1,128)}', space=vmem, size = 0x9000, scoped, tag = 'internal scratch']
  %s0 = inlined_call_operand.hbm [shape: f32[2,16,32], index: 0, kind: input, shape index: {}]
  %s1 = inlined_call_operand.hbm [shape: f32[16,16], index: 1, kind: input, shape index: {}]
  %s2 = inlined_call_operand.hbm [shape: f32[32,128], index: 2, kind: input, shape index: {}]
  %s3 = inlined_call_operand.vmem [shape: f32[1,128], index: 3, kind: input, shape index: {}]
  %s4 = inlined_call_operand.hbm [shape: f32[2,16,128], index: 4, kind: output, shape index: {}]
  %s5 = sld [smem:[#allocation0]]
  $region38: #{tpu_custom_call.1} parent=0
    _
  %s7 = ssub.s32 1, %s5
  %s8 = scalar_select 0, %s7, %s5
  $region1: #{tpu_custom_call.1} parent=0
    #allocation2 [shape = 'u8[16384]{0}', space=vmem, size = 0x4000, scoped, tag = 'input window, operand 0, single buffered']
    #allocation3 [shape = 's32[1]{0}', space=sflag, size = 0x4, scoped, tag = 'scoped memory for tpu_custom_call.1']
    #allocation4 [shape = 's32[1]{0}', space=sflag, size = 0x4, scoped, tag = 'scoped memory for tpu_custom_call.1']
    #allocation5 [shape = 'u8[8192]{0}', space=vmem, size = 0x2000, scoped, tag = 'input window, operand 1, single buffered']
    #allocation6 [shape = 's32[1]{0}', space=sflag, size = 0x4, scoped, tag = 'scoped memory for tpu_custom_call.1']
    #allocation7 [shape = 'u8[16384]{0}', space=vmem, size = 0x4000, scoped, tag = 'input window, operand 2, single buffered']
    #allocation8 [shape = 'u8[16384]{0}', space=vmem, size = 0x4000, scoped, tag = 'output window, operand 0, single buffered']
    %9 = vsyncpa [#allocation3], 0
    %10 = vsyncpa [#allocation6], 0
    %11 = vsyncpa [#allocation4], 0
    // Predicated region
    $region2: #{tpu_custom_call.1} parent=1 // pred_check
      _
    $region3: #{tpu_custom_call.1} parent=1 // pred_check_branch
      %13 = sbr.rel (0) target = $region5
    $region4: #{tpu_custom_call.1} parent=1 // pred_region
      %15 = vsyncadd [#allocation3], 0
      %s16 = sshll.u32 %s0, 4
      %s17 = int_to_ptr.hbm [resolvable:$true] %s16
      %s18 = sshll.u32 [#allocation2], 4
      %s19 = int_to_ptr.vmem [resolvable:$true] %s18
      %24 = dma.hbm_to_vmem [thread:$0]  %s17, 512, %s19, [#allocation3], 128, 128, 8
    $region5: #{tpu_custom_call.1} parent=1 // pred_fallthru
      _
    // Predicated region
    $region6: #{tpu_custom_call.1} parent=1 // pred_check
      _
    $region7: #{tpu_custom_call.1} parent=1 // pred_check_branch
      %26 = sbr.rel (0) target = $region9
    $region8: #{tpu_custom_call.1} parent=1 // pred_region
      %28 = vsyncadd [#allocation6], 0
      %s29 = sshll.u32 %s1, 4
      %s30 = int_to_ptr.hbm [resolvable:$true] %s29
      %s31 = sshll.u32 [#allocation5], 4
      %s32 = int_to_ptr.vmem [resolvable:$true] %s31
      %37 = dma.hbm_to_vmem [thread:$0]  %s30, 256, %s32, [#allocation6], 128, 128, 8
    $region9: #{tpu_custom_call.1} parent=1 // pred_fallthru
      _
    // Predicated region
    $region10: #{tpu_custom_call.1} parent=1 // pred_check
      _
    $region11: #{tpu_custom_call.1} parent=1 // pred_check_branch
      %39 = sbr.rel (0) target = $region13
    $region12: #{tpu_custom_call.1} parent=1 // pred_region
      %41 = vsyncadd [#allocation6], 0
      %s42 = sshll.u32 %s2, 4
      %s43 = int_to_ptr.hbm [resolvable:$true] %s42
      %s44 = sshll.u32 [#allocation7], 4
      %s45 = int_to_ptr.vmem [resolvable:$true] %s44
      %50 = dma.hbm_to_vmem [thread:$0]  %s43, 512, %s45, [#allocation6], 128, 128, 8
    $region13: #{tpu_custom_call.1} parent=1 // pred_fallthru
      _
    // Predicated region
    $region14: #{tpu_custom_call.1} parent=1 // pred_check
      _
    $region15: #{tpu_custom_call.1} parent=1 // pred_check_branch
      %52 = sbr.rel (0) target = $region17
    $region16: #{tpu_custom_call.1} parent=1 // pred_region
      _
    $region17: #{tpu_custom_call.1} parent=1 // pred_fallthru
      _
    // Predicated region
    $region18: #{tpu_custom_call.1} parent=1 // pred_check
      _
    $region19: #{tpu_custom_call.1} parent=1 // pred_check_branch
      %54 = sbr.rel (0) target = $region21
    $region20: #{tpu_custom_call.1} parent=1 // pred_region
      %56 = dma.done [#allocation3], 512
    $region21: #{tpu_custom_call.1} parent=1 // pred_fallthru
      _
    // Predicated region
    $region22: #{tpu_custom_call.1} parent=1 // pred_check
      _
    $region23: #{tpu_custom_call.1} parent=1 // pred_check_branch
      %58 = sbr.rel (0) target = $region25
    $region24: #{tpu_custom_call.1} parent=1 // pred_region
      %60 = dma.done [#allocation6], 256
    $region25: #{tpu_custom_call.1} parent=1 // pred_fallthru
      _
    // Predicated region
    $region26: #{tpu_custom_call.1} parent=1 // pred_check
      _
    $region27: #{tpu_custom_call.1} parent=1 // pred_check_branch
      %62 = sbr.rel (0) target = $region29
    $region28: #{tpu_custom_call.1} parent=1 // pred_region
      %64 = dma.done [#allocation6], 512
    $region29: #{tpu_custom_call.1} parent=1 // pred_fallthru
      _
    %v65 = vld [vmem:[#allocation5] sm:$0xff]
    %v66 = vld [vmem:[#allocation5 + $0x8] sm:$0xff]
    %vm67 = vcmp.gt.f32.partialorder %v65, 0.5
    %vm68 = vcmp.gt.f32.partialorder %v66, 0.5
    %v69 = vsel %vm67, 1, 0
    %v70 = vsel %vm68, 1, 0
    %v71 = vcvt.s32.f32 %v69
    %v72 = vcvt.s32.f32 %v70
    %vm73 = vcmask 130048
    %v74 = vsel %vm73, %v71, 0.0
    %75 = vadd.xlane.f32.xlu0 %v74
    %v76 = vpop.xlane.xlu0 %75
    %v77 = vsel %vm73, %v72, 0.0
    %78 = vadd.xlane.f32.xlu0 %v77
    %v79 = vpop.xlane.xlu0 %78
    %v80 = vadd.f32 %v76, 1.0
    %v81 = vadd.f32 %v79, 1.0
    %v82 = vrcp.pop %v80
    %v83 = vrcp.pop %v81
    %v84 = vmul.f32 %v80, %v82
    %v85 = vmul.f32 %v81, %v83
    %v86 = vsub.f32 2.0, %v84
    %v87 = vsub.f32 2.0, %v85
    %v88 = vmul.f32 %v82, %v86
    %v89 = vmul.f32 %v83, %v87
    %v90 = vld [vmem:[#allocation7] sm:$0xff]
    %v91 = vld [vmem:[#allocation7 + $0x8] sm:$0xff]
    %v92 = vld [vmem:[#allocation7 + $0x10] sm:$0xff]
    %v93 = vld [vmem:[#allocation7 + $0x18] sm:$0xff]
    %v94 = vld [vmem:[#allocation2] sm:$0xff]
    %v95 = vld [vmem:[#allocation2 + $0x8] sm:$0xff]
    %v97 = vsel %vm73, %v65, 0
    %v100 = vsel %vm73, %v66, 0
    %102 = vmatpush.msra.mxu0 0.0
    %103 = vmatpush.msra.mxu0 0.0
    %104 = vmatpush.msra.mxu0 0.0
    %105 = vmatpush.msra.mxu0 0.0
    %106 = vmatpush.msra.mxu0 0.0
    %107 = vmatpush.msra.mxu0 0.0
    %108 = vmatpush.msra.mxu0 0.0
    %109 = vmatpush.msra.mxu0 0.0
    %110 = vmatpush.msra.mxu0 0.0
    %111 = vmatpush.msra.mxu0 0.0
    %112 = vmatpush.msra.mxu0 0.0
    %113 = vmatpush.msra.mxu0 0.0
    %114 = vmatpush.msra.mxu0 0.0
    %115 = vmatpush.msra.mxu0 0.0
    %116 = vmatpush.msra.mxu0 %v95
    %117 = vmatpush.msra.mxu0 %v94
    %118 = vmatmul.f32.gmra.mxu0 %v97
    %v119 = vpop.f32.mrf.mxu0
    %v120 = vadd.f32 0.0, %v119
    %121 = vmatmul.f32.gmra.mxu0 %v100
    %v122 = vpop.f32.mrf.mxu0
    %v123 = vadd.f32 0.0, %v122
    %124 = vdwg.mxu0
    %v125 = vmul.f32 %v120, %v88
    %v126 = vmul.f32 %v123, %v89
    %s127 = scalar_lea.vmem [#allocation2], 16
    %v128 = vld [vmem:[%s127] sm:$0xff]
    %v129 = vld [vmem:[%s127 + $0x8] sm:$0xff]
    %130 = vmatpush.msra.mxu0 0.0
    %131 = vmatpush.msra.mxu0 0.0
    %132 = vmatpush.msra.mxu0 0.0
    %133 = vmatpush.msra.mxu0 0.0
    %134 = vmatpush.msra.mxu0 0.0
    %135 = vmatpush.msra.mxu0 0.0
    %136 = vmatpush.msra.mxu0 0.0
    %137 = vmatpush.msra.mxu0 0.0
    %138 = vmatpush.msra.mxu0 0.0
    %139 = vmatpush.msra.mxu0 0.0
    %140 = vmatpush.msra.mxu0 0.0
    %141 = vmatpush.msra.mxu0 0.0
    %142 = vmatpush.msra.mxu0 0.0
    %143 = vmatpush.msra.mxu0 0.0
    %144 = vmatpush.msra.mxu0 %v129
    %145 = vmatpush.msra.mxu0 %v128
    %146 = vmatmul.f32.gmra.mxu0 %v97
    %v147 = vpop.f32.mrf.mxu0
    %v148 = vadd.f32 0.0, %v147
    %149 = vmatmul.f32.gmra.mxu0 %v100
    %v150 = vpop.f32.mrf.mxu0
    %v151 = vadd.f32 0.0, %v150
    %152 = vdwg.mxu0
    %v153 = vmul.f32 %v148, %v88
    %v154 = vmul.f32 %v151, %v89
    %v155 = vld [vmem:[%s3] sm:$0x1]
    %v157 = vperm.slane %v155, 0
    %vm159 = vcmask 261120
    %v161 = vsel %vm159, %v125, 0
    %v164 = vsel %vm159, %v126, 0
    %v167 = vsel %vm159, %v153, 0
    %v170 = vsel %vm159, %v154, 0
    %172 = vmatpush.msra.mxu0 0.0
    %173 = vmatpush.msra.mxu0 0.0
    %174 = vmatpush.msra.mxu0 0.0
    %175 = vmatpush.msra.mxu0 0.0
    %176 = vmatpush.msra.mxu0 0.0
    %177 = vmatpush.msra.mxu0 0.0
    %178 = vmatpush.msra.mxu0 0.0
    %179 = vmatpush.msra.mxu0 0.0
    %180 = vmatpush.msra.mxu0 0.0
    %181 = vmatpush.msra.mxu0 0.0
    %182 = vmatpush.msra.mxu0 0.0
    %183 = vmatpush.msra.mxu0 0.0
    %184 = vmatpush.msra.mxu0 %v93
    %185 = vmatpush.msra.mxu0 %v92
    %186 = vmatpush.msra.mxu0 %v91
    %187 = vmatpush.msra.mxu0 %v90
    %188 = vmatmul.f32.gmra.mxu0 %v161
    %v189 = vpop.f32.mrf.mxu0
    %v190 = vadd.f32 %v157, %v189
    %191 = vmatmul.f32.gmra.mxu0 %v164
    %v192 = vpop.f32.mrf.mxu0
    %v193 = vadd.f32 %v157, %v192
    %194 = vmatmul.f32.gmra.mxu0 %v167
    %v195 = vpop.f32.mrf.mxu0
    %v196 = vadd.f32 %v157, %v195
    %197 = vmatmul.f32.gmra.mxu0 %v170
    %v198 = vpop.f32.mrf.mxu0
    %v199 = vadd.f32 %v157, %v198
    %200 = vdwg.mxu0
    %201 = vst [vmem:[#allocation8] sm:$0xff] %v190
    %202 = vst [vmem:[#allocation8 + $0x8] sm:$0xff] %v193
    %203 = vst [vmem:[#allocation8 + $0x10] sm:$0xff] %v196
    %204 = vst [vmem:[#allocation8 + $0x18] sm:$0xff] %v199
    // Predicated region
    $region30: #{tpu_custom_call.1} parent=1 // pred_check
      _
    $region31: #{tpu_custom_call.1} parent=1 // pred_check_branch
      %206 = sbr.rel (0) target = $region33
    $region32: #{tpu_custom_call.1} parent=1 // pred_region
      %208 = vsyncadd [#allocation4], 0
      %s209 = sshll.u32 [#allocation8], 4
      %s210 = int_to_ptr.vmem [resolvable:$true] %s209
      %s211 = sshll.u32 %s4, 4
      %s212 = int_to_ptr.hbm [resolvable:$true] %s211
      %217 = dma.vmem_to_hbm [thread:$0]  %s210, 512, %s212, [#allocation4], 128, 128, 8
    $region33: #{tpu_custom_call.1} parent=1 // pred_fallthru
      _
    // Predicated region
    $region34: #{tpu_custom_call.1} parent=1 // pred_check
      _
    $region35: #{tpu_custom_call.1} parent=1 // pred_check_branch
      %219 = sbr.rel (0) target = $region37
    $region36: #{tpu_custom_call.1} parent=1 // pred_region
      %221 = dma.done [#allocation4], 512
    $region37: #{tpu_custom_call.1} parent=1 // pred_fallthru
      _
    %222 = vsyncpa [#allocation3], 1
    %223 = vsyncpa [#allocation6], 1
    %224 = vsyncpa [#allocation4], 1

</llo_original>
